<compile_context>
chip_gen: v7x
topology: tpu7x:2x2x1
jax: 0.10.0
libtpu: 0.0.40
codegen_flags: <defaults>
</compile_context>

<pallas_src>
import functools

import jax
import jax.numpy as jnp
from jax.experimental import pallas as pl
from jax.experimental.pallas import tpu as pltpu


def _pred_kernel(sound_ref, caption_ref, out_ref, acc_ref):
    k = pl.program_id(1)

    @pl.when(k == 0)
    def _init():
        acc_ref[...] = jnp.zeros_like(acc_ref)

    # Elementwise multiply (VPU) + lane-axis reduction (XLU); accumulate in f32.
    prod = sound_ref[...].astype(jnp.float32) * caption_ref[...].astype(jnp.float32)
    acc_ref[...] += jnp.sum(prod, axis=1, keepdims=True)  # (TB, 1)

    @pl.when(k == pl.num_programs(1) - 1)
    def _finalize():
        dot = acc_ref[...]
        # sigmoid(x) = 1 / (1 + exp(-x)); exp + approximate reciprocal both
        # run on the otherwise-idle EUP slot.
        denom = 1.0 + jnp.exp(-dot)
        out_ref[...] = pl.reciprocal(denom, approx=True).astype(out_ref.dtype)


def _round_up(x: int, m: int) -> int:
    return ((x + m - 1) // m) * m


@functools.partial(jax.jit, static_argnames=("tb", "td"))
def pred_model_forward(sound: jax.Array, caption: jax.Array,
                       *, tb: int = 512, td: int = 1024) -> jax.Array:
    """sound, caption: (B, D) float -> (B,) float32 = sigmoid(row dot product)."""
    assert sound.shape == caption.shape and sound.ndim == 2
    B, D = sound.shape

    # Tile sizes: multiples of (8, 128), capped at the (padded) array extents.
    TB = min(tb, _round_up(B, 8))
    TD = min(td, _round_up(D, 128))
    B_pad = _round_up(B, TB)
    D_pad = _round_up(D, TD)

    if (B_pad, D_pad) != (B, D):
        pad = ((0, B_pad - B), (0, D_pad - D))
        sound = jnp.pad(sound, pad)      # zero padding is exact for a dot product
        caption = jnp.pad(caption, pad)

    grid = (B_pad // TB, D_pad // TD)    # (batch tiles, feature tiles)

    out = pl.pallas_call(
        _pred_kernel,
        out_shape=jax.ShapeDtypeStruct((B_pad, 1), jnp.float32),
        grid_spec=pltpu.PrefetchScalarGridSpec(
            num_scalar_prefetch=0,
            grid=grid,
            in_specs=[
                pl.BlockSpec((TB, TD), lambda i, k: (i, k)),
                pl.BlockSpec((TB, TD), lambda i, k: (i, k)),
            ],
            # Same output block across the reduction axis k -> resident accumulator.
            out_specs=pl.BlockSpec((TB, 1), lambda i, k: (i, 0)),
            scratch_shapes=[pltpu.VMEM((TB, 1), jnp.float32)],
        ),
        compiler_params=pltpu.CompilerParams(
            # Batch tiles are independent (megacore shards them on v7x);
            # the feature axis is a sequential reduction.
            dimension_semantics=("parallel", "arbitrary"),
        ),
    )(sound, caption)

    return out[:B, 0]


if __name__ == "__main__":
    key = jax.random.PRNGKey(0)
    k1, k2, k3, k4 = jax.random.split(key, 4)

    # Small shapes matching the module's (batch, feature) convention.
    B, D = 2, 32
    sound = jax.random.normal(k1, (B, D), dtype=jnp.float32)
    caption = jax.random.normal(k2, (B, D), dtype=jnp.float32)

    out = pred_model_forward(sound, caption)
    jax.block_until_ready(out)

    ref = jax.nn.sigmoid(jnp.sum(sound * caption, axis=1))
    assert out.shape == (B,)
    assert jnp.allclose(out, ref, atol=2e-3, rtol=2e-3), (out, ref)

    # Second (still small) case exercising padding + multi-tile grid on both axes.
    B2, D2 = 48, 300
    s2 = jax.random.normal(k3, (B2, D2), dtype=jnp.float32)
    c2 = jax.random.normal(k4, (B2, D2), dtype=jnp.float32)
    out2 = pred_model_forward(s2, c2, tb=16, td=128)
    jax.block_until_ready(out2)
    ref2 = jax.nn.sigmoid(jnp.sum(s2 * c2, axis=1))
    assert out2.shape == (B2,)
    assert jnp.allclose(out2, ref2, atol=2e-3, rtol=2e-3)

    print("KERNEL_OK")
</pallas_src>

<mosaic_0001>
module attributes {stable_mosaic.version = 11 : i64} {
  func.func @_pred_kernel(%arg0: i32, %arg1: i32, %arg2: memref<8x128xf32, #tpu.memory_space<vmem>>, %arg3: memref<8x128xf32, #tpu.memory_space<vmem>>, %arg4: memref<8x1xf32, #tpu.memory_space<vmem>>, %arg5: memref<8x1xf32, #tpu.memory_space<vmem>>) attributes {dimension_semantics = [#tpu.dimension_semantics<parallel>, #tpu.dimension_semantics<arbitrary>], iteration_bounds = array<i64: 1, 1>, scalar_prefetch = 0 : i64, scratch_operands = 1 : i64, tpu.core_type = #tpu.core_type<tc>, window_params = [{transform_indices = @transform_0, window_bounds = array<i64: 8, 128>}, {transform_indices = @transform_1, window_bounds = array<i64: 8, 128>}, {transform_indices = @transform_2, window_bounds = array<i64: 8, 1>}]} {
    %c0_i32 = arith.constant 0 : i32
    %0 = arith.cmpi eq, %arg1, %c0_i32 : i32
    %1 = arith.extui %0 : i1 to i32
    %c0_i32_0 = arith.constant 0 : i32
    %2 = arith.cmpi ne, %1, %c0_i32_0 : i32
    scf.if %2 {
      %cst_10 = arith.constant 0.000000e+00 : f32
      %14 = vector.broadcast %cst_10 : f32 to vector<8x1xf32>
      %c0_11 = arith.constant 0 : index
      %c0_12 = arith.constant 0 : index
      %15 = vector.load %arg5[%c0_11, %c0_12] : memref<8x1xf32, #tpu.memory_space<vmem>>, vector<8x1xf32>
      tpu.vector_store %arg5[%c0_11, %c0_12], %14 {strides = array<i32>} : memref<8x1xf32, #tpu.memory_space<vmem>>, vector<8x1xf32>,
    } else {
    }
    %c0 = arith.constant 0 : index
    %c0_1 = arith.constant 0 : index
    %3 = vector.load %arg2[%c0, %c0_1] : memref<8x128xf32, #tpu.memory_space<vmem>>, vector<8x128xf32>
    %c0_2 = arith.constant 0 : index
    %c0_3 = arith.constant 0 : index
    %4 = vector.load %arg3[%c0_2, %c0_3] : memref<8x128xf32, #tpu.memory_space<vmem>>, vector<8x128xf32>
    %5 = arith.mulf %3, %4 : vector<8x128xf32>
    %c0_4 = arith.constant 0 : index
    %c0_5 = arith.constant 0 : index
    %6 = vector.load %arg5[%c0_4, %c0_5] : memref<8x1xf32, #tpu.memory_space<vmem>>, vector<8x1xf32>
    %cst = arith.constant dense<0.000000e+00> : vector<8xf32>
    %7 = vector.multi_reduction <add>, %5, %cst [1] : vector<8x128xf32> to vector<8xf32>
    %8 = vector.shape_cast %7 : vector<8xf32> to vector<8x1xf32>
    %9 = arith.addf %6, %8 : vector<8x1xf32>
    %c0_6 = arith.constant 0 : index
    %c0_7 = arith.constant 0 : index
    %10 = vector.load %arg5[%c0_6, %c0_7] : memref<8x1xf32, #tpu.memory_space<vmem>>, vector<8x1xf32>
    tpu.vector_store %arg5[%c0_6, %c0_7], %9 {strides = array<i32>} : memref<8x1xf32, #tpu.memory_space<vmem>>, vector<8x1xf32>,
    %c0_i32_8 = arith.constant 0 : i32
    %11 = arith.cmpi eq, %arg1, %c0_i32_8 : i32
    %12 = arith.extui %11 : i1 to i32
    %c0_i32_9 = arith.constant 0 : i32
    %13 = arith.cmpi ne, %12, %c0_i32_9 : i32
    scf.if %13 {
      %c0_10 = arith.constant 0 : index
      %c0_11 = arith.constant 0 : index
      %14 = vector.load %arg5[%c0_10, %c0_11] : memref<8x1xf32, #tpu.memory_space<vmem>>, vector<8x1xf32>
      %cst_12 = arith.constant 0.000000e+00 : f32
      %15 = vector.broadcast %cst_12 : f32 to vector<8x1xf32>
      %16 = arith.subf %15, %14 : vector<8x1xf32>
      %17 = math.exp %16 : vector<8x1xf32>
      %cst_13 = arith.constant 1.000000e+00 : f32
      %18 = vector.broadcast %cst_13 : f32 to vector<8x1xf32>
      %19 = arith.addf %18, %17 : vector<8x1xf32>
      %20 = tpu.reciprocal %19 {approx = true} : vector<8x1xf32> -> vector<8x1xf32>
      %c0_14 = arith.constant 0 : index
      %c0_15 = arith.constant 0 : index
      %21 = vector.load %arg4[%c0_14, %c0_15] : memref<8x1xf32, #tpu.memory_space<vmem>>, vector<8x1xf32>
      tpu.vector_store %arg4[%c0_14, %c0_15], %20 {strides = array<i32>} : memref<8x1xf32, #tpu.memory_space<vmem>>, vector<8x1xf32>,
    } else {
    }
    return
  }
  func.func @transform_0(%arg0: i32, %arg1: i32) -> (i32, i32) {
    %c0_i32 = arith.constant 0 : i32
    return %arg0, %arg1 : i32, i32
  }
  func.func @transform_1(%arg0: i32, %arg1: i32) -> (i32, i32) {
    %c0_i32 = arith.constant 0 : i32
    return %arg0, %arg1 : i32, i32
  }
  func.func @transform_2(%arg0: i32, %arg1: i32) -> (i32, i32) {
    %c0_i32 = arith.constant 0 : i32
    %c0_i32_0 = arith.constant 0 : i32
    return %arg0, %c0_i32 : i32, i32
  }
}

</mosaic_0001>

<llo_original>
// kernel: pred_model_forward.1
$region0: #{pred_model_forward.1}
  #allocation0 [shape = 'u32[]', space=smem, size = 0x4, offset = 0x4, fixed_abs, tag = 'smem constant byte address 0x4 - core index']
  #allocation1 [shape = 'u32[144,128]{1,0:T(1,128)}', space=vmem, size = 0x12000, scoped, tag = 'internal scratch']
  #allocation2 [shape = 'f32[8,1]{1,0:T(8,128)}', space=vmem, size = 0x1000, scoped, tag = 'scratch operand']
  %s0 = inlined_call_operand.vmem [shape: f32[8,128], index: 0, kind: input, shape index: {}]
  %s1 = inlined_call_operand.vmem [shape: f32[8,128], index: 1, kind: input, shape index: {}]
  %s2 = inlined_call_operand.vmem [shape: f32[8,1], index: 2, kind: output, shape index: {}]
  %s3 = sld [smem:[#allocation0]]
  $region26: #{pred_model_forward.1} parent=0
    _
  %s5 = ssub.s32 1, %s3
  %s6 = scalar_select 0, %s5, %s3
  // Predicated region
  $region2: #{pred_model_forward.1} parent=0 // pred_check
    _
  $region3: #{pred_model_forward.1} parent=0 // pred_check_branch
    %8 = sbr.rel (0) target = $region5
  $region4: #{pred_model_forward.1} parent=0 // pred_region
    _
  $region5: #{pred_model_forward.1} parent=0 // pred_fallthru
    _
  // Predicated region
  $region6: #{pred_model_forward.1} parent=0 // pred_check
    _
  $region7: #{pred_model_forward.1} parent=0 // pred_check_branch
    %10 = sbr.rel (0) target = $region9
  $region8: #{pred_model_forward.1} parent=0 // pred_region
    _
  $region9: #{pred_model_forward.1} parent=0 // pred_fallthru
    _
  %p11 = scmp.eq.s32.totalorder 0, 0
  // Predicated region
  $region10: #{pred_model_forward.1} parent=0 // pred_check
    %p12 = pneg %p11
  $region11: #{pred_model_forward.1} parent=0 // pred_check_branch
    %14 = sbr.rel (%p12) target = $region13
  $region12: #{pred_model_forward.1} parent=0 // pred_region
    %vm15 = vcmask 7168
    %16 = vst.msk [vmem:[#allocation2] sm:$0xff] %vm15, 0.0
  $region13: #{pred_model_forward.1} parent=0 // pred_fallthru
    _
  %v17 = vld [vmem:[%s0] sm:$0xff]
  %v18 = vld [vmem:[%s1] sm:$0xff]
  %v19 = vmul.f32 %v17, %v18
  %v20 = vld [vmem:[#allocation2] sm:$0xff]
  %21 = vadd.xlane.f32.xlu0 %v19
  %v22 = vpop.xlane.xlu0 %21
  %v23 = vadd.f32 %v20, %v22
  %vm24 = vcmask 7168
  %25 = vst.msk [vmem:[#allocation2] sm:$0xff] %vm24, %v23
  // Predicated region
  $region14: #{pred_model_forward.1} parent=0 // pred_check
    %p26 = pneg %p11
  $region15: #{pred_model_forward.1} parent=0 // pred_check_branch
    %28 = sbr.rel (%p26) target = $region17
  $region16: #{pred_model_forward.1} parent=0 // pred_region
    %v29 = vld [vmem:[#allocation2] sm:$0xff]
    %v30 = vsub.f32 0.0, %v29
    %v31 = vmul.f32 %v30, 1.442695
    %v32 = vpow.pop %v31
    %v33 = vadd.f32 %v32, 1.0
    %v34 = vrcp.pop %v33
    %35 = vst.msk [vmem:[%s2] sm:$0xff] %vm24, %v34
  $region17: #{pred_model_forward.1} parent=0 // pred_fallthru
    _
  // Predicated region
  $region18: #{pred_model_forward.1} parent=0 // pred_check
    _
  $region19: #{pred_model_forward.1} parent=0 // pred_check_branch
    %37 = sbr.rel (0) target = $region21
  $region20: #{pred_model_forward.1} parent=0 // pred_region
    _
  $region21: #{pred_model_forward.1} parent=0 // pred_fallthru
    _
  // Predicated region
  $region22: #{pred_model_forward.1} parent=0 // pred_check
    _
  $region23: #{pred_model_forward.1} parent=0 // pred_check_branch
    %39 = sbr.rel (0) target = $region25
  $region24: #{pred_model_forward.1} parent=0 // pred_region
    _
  $region25: #{pred_model_forward.1} parent=0 // pred_fallthru
    _

</llo_original>
